<compile_context>
chip_gen: v7x
topology: tpu7x:2x2x1
jax: 0.10.0
libtpu: 0.0.40
codegen_flags: <defaults>
</compile_context>

<pallas_src>
import functools

import jax
import jax.numpy as jnp
from jax.experimental import pallas as pl
from jax.experimental.pallas import tpu as pltpu

_ROW_PACK = 16   # bf16 packs 2 rows per sublane -> row tiles multiple of 16


def _round_up(x: int, m: int) -> int:
    return ((x + m - 1) // m) * m


def _cdiv(a: int, b: int) -> int:
    return (a + b - 1) // b


def _fused_mlp_kernel(*refs, num_layers: int, sigmoid_output: bool,
                      compute_dtype):
    """Whole-MLP fused kernel.

    refs = (x_ref, w0_ref, b0_ref, ..., w{L-1}_ref, b{L-1}_ref, o_ref)
      x_ref : (TILE_B, IN)       compute_dtype (bf16)
      w_k   : (Din, Dout)        compute_dtype (bf16)
      b_k   : (1, Dout)          float32
      o_ref : (TILE_B, OUT)      float32 (true width, no lane padding)
    Intermediate activations live entirely in vregs/VMEM.
    """
    x_ref = refs[0]
    o_ref = refs[1 + 2 * num_layers]

    h = x_ref[...]
    for layer in range(num_layers):
        w_ref = refs[1 + 2 * layer]
        b_ref = refs[2 + 2 * layer]
        # MXU matmul: bf16 operands, f32 accumulation.
        y = jnp.dot(h.astype(compute_dtype), w_ref[...],
                    preferred_element_type=jnp.float32)
        y = y + b_ref[...]                    # f32 epilogue (broadcast (1,N))
        if layer < num_layers - 1:
            h = jnp.maximum(y, 0.0)           # ReLU
        elif sigmoid_output:
            # sigmoid = 1/(1+exp(-y)): exp + approx recip both on the EUP slot.
            h = pl.reciprocal(1.0 + jnp.exp(-y), approx=True)
        else:
            h = y
    o_ref[...] = h.astype(o_ref.dtype)


def init_mlp_params(key, input_dim, hidden_dim, output_dim, num_layers,
                    dtype=jnp.float32):
    """Matches nn.Linear default init: U(-1/sqrt(fan_in), 1/sqrt(fan_in))."""
    h = [hidden_dim] * (num_layers - 1)
    dims = list(zip([input_dim] + h, h + [output_dim]))
    params = []
    for (n_in, n_out) in dims:
        key, kw, kb = jax.random.split(key, 3)
        bound = 1.0 / jnp.sqrt(jnp.asarray(n_in, dtype))
        w = jax.random.uniform(kw, (n_in, n_out), dtype, -bound, bound)
        b = jax.random.uniform(kb, (1, n_out), dtype, -bound, bound)
        params.append((w, b))
    return params


def _choose_batch_tiling(batch: int, tile_b_max: int):
    """Pick (tile_rows, n_tiles): rows multiple of 16 (bf16 packing); if more
    than one tile is needed, keep the tile count even so both v7x TensorCores
    get balanced work from the single 'parallel' grid axis."""
    if batch <= tile_b_max:
        return _round_up(max(batch, _ROW_PACK), _ROW_PACK), 1
    n_tiles = _round_up(_cdiv(batch, tile_b_max), 2)
    tb = _round_up(_cdiv(batch, n_tiles), _ROW_PACK)
    n_tiles = _cdiv(batch, tb)
    if n_tiles % 2:
        n_tiles += 1
    return tb, n_tiles


def mlp_forward(x, params, sigmoid_output: bool = False, *,
                compute_dtype=jnp.bfloat16, tile_b: int = 2048):
    """x: (..., input_dim) -> (..., output_dim), single fused Pallas kernel."""
    lead_shape = x.shape[:-1]
    in_dim = x.shape[-1]
    out_dim = params[-1][0].shape[1]
    num_layers = len(params)

    # Single cast to the compute dtype; no feature padding, no f32 staging.
    x2 = x.reshape(-1, in_dim).astype(compute_dtype)
    batch = x2.shape[0]

    tb, n_tiles = _choose_batch_tiling(batch, tile_b)
    batch_pad = tb * n_tiles
    if batch_pad != batch:
        x2 = jnp.pad(x2, ((0, batch_pad - batch), (0, 0)))  # batch-only pad

    flat_wb, wb_specs = [], []
    for (w, b) in params:
        wp = w.astype(compute_dtype)                 # bf16 MXU operand
        bp = b.astype(jnp.float32).reshape(1, -1)    # f32 epilogue bias
        flat_wb += [wp, bp]
        # Constant index_map -> weights/bias stay VMEM-resident across tiles.
        wb_specs.append(pl.BlockSpec(wp.shape, lambda i: (0, 0)))
        wb_specs.append(pl.BlockSpec(bp.shape, lambda i: (0, 0)))

    kernel = functools.partial(_fused_mlp_kernel, num_layers=num_layers,
                               sigmoid_output=sigmoid_output,
                               compute_dtype=compute_dtype)

    out = pl.pallas_call(
        kernel,
        out_shape=jax.ShapeDtypeStruct((batch_pad, out_dim), jnp.float32),
        grid_spec=pltpu.PrefetchScalarGridSpec(
            num_scalar_prefetch=0,
            grid=(n_tiles,),
            in_specs=[pl.BlockSpec((tb, in_dim), lambda i: (i, 0))]
                     + wb_specs,
            out_specs=pl.BlockSpec((tb, out_dim), lambda i: (i, 0)),
        ),
        compiler_params=pltpu.CompilerParams(
            dimension_semantics=("parallel",),   # shard batch tiles across TCs
        ),
    )(x2, *flat_wb)

    if batch_pad != batch:
        out = out[:batch]                        # drop padded batch rows only
    return out.reshape(*lead_shape, out_dim)


if __name__ == "__main__":
    batch, input_dim, hidden_dim, output_dim, num_layers = 8, 32, 64, 16, 3
    key = jax.random.PRNGKey(0)
    key, kx = jax.random.split(key)
    x = jax.random.normal(kx, (batch, input_dim), jnp.float32)
    params = init_mlp_params(key, input_dim, hidden_dim, output_dim, num_layers)

    # Pure-JAX reference using the same bf16-operand / f32-accumulate recipe.
    def reference(xs, apply_sigmoid):
        ref = xs.astype(jnp.float32)
        for i, (w, b) in enumerate(params):
            ref = jnp.dot(ref.astype(jnp.bfloat16), w.astype(jnp.bfloat16),
                          preferred_element_type=jnp.float32) + b
            if i < num_layers - 1:
                ref = jnp.maximum(ref, 0.0)
        return jax.nn.sigmoid(ref) if apply_sigmoid else ref

    # --- check 1: sigmoid head, small batch ---
    out = jax.block_until_ready(mlp_forward(x, params, sigmoid_output=True))
    ref = reference(x, True)
    assert out.shape == (batch, output_dim)
    assert jnp.allclose(out, ref, atol=1e-2, rtol=1e-2), (
        float(jnp.max(jnp.abs(out - ref))))

    # --- check 2: non-multiple-of-tile batch, no sigmoid ---
    key, kx2 = jax.random.split(key)
    x2 = jax.random.normal(kx2, (20, input_dim), jnp.float32)
    out2 = jax.block_until_ready(mlp_forward(x2, params, sigmoid_output=False))
    ref2 = reference(x2, False)
    assert out2.shape == (20, output_dim)
    assert jnp.allclose(out2, ref2, atol=5e-3, rtol=5e-3), (
        float(jnp.max(jnp.abs(out2 - ref2))))

    # --- check 3: multi-tile path (even tile count, batch padding) ---
    key, kx3 = jax.random.split(key)
    x3 = jax.random.normal(kx3, (70, input_dim), jnp.float32)
    out3 = jax.block_until_ready(
        mlp_forward(x3, params, sigmoid_output=True, tile_b=32))
    ref3 = reference(x3, True)
    assert out3.shape == (70, output_dim)
    assert jnp.allclose(out3, ref3, atol=1e-2, rtol=1e-2), (
        float(jnp.max(jnp.abs(out3 - ref3))))

    print("KERNEL_OK")
</pallas_src>

<mosaic_0001>
module attributes {stable_mosaic.version = 11 : i64} {
  func.func @_fused_mlp_kernel(%arg0: i32, %arg1: memref<16x32xbf16, #tpu.memory_space<vmem>>, %arg2: memref<32x64xbf16, #tpu.memory_space<vmem>>, %arg3: memref<1x64xf32, #tpu.memory_space<vmem>>, %arg4: memref<64x64xbf16, #tpu.memory_space<vmem>>, %arg5: memref<1x64xf32, #tpu.memory_space<vmem>>, %arg6: memref<64x16xbf16, #tpu.memory_space<vmem>>, %arg7: memref<1x16xf32, #tpu.memory_space<vmem>>, %arg8: memref<16x16xf32, #tpu.memory_space<vmem>>) attributes {dimension_semantics = [#tpu.dimension_semantics<parallel>], iteration_bounds = array<i64: 1>, scalar_prefetch = 0 : i64, scratch_operands = 0 : i64, tpu.core_type = #tpu.core_type<tc>, window_params = [{transform_indices = @transform_0, window_bounds = array<i64: 16, 32>}, {pipeline_mode = #tpu.pipeline_mode<synchronous>, transform_indices = @transform_1, window_bounds = array<i64: 32, 64>}, {pipeline_mode = #tpu.pipeline_mode<synchronous>, transform_indices = @transform_2, window_bounds = array<i64: 1, 64>}, {pipeline_mode = #tpu.pipeline_mode<synchronous>, transform_indices = @transform_3, window_bounds = array<i64: 64, 64>}, {pipeline_mode = #tpu.pipeline_mode<synchronous>, transform_indices = @transform_4, window_bounds = array<i64: 1, 64>}, {pipeline_mode = #tpu.pipeline_mode<synchronous>, transform_indices = @transform_5, window_bounds = array<i64: 64, 16>}, {pipeline_mode = #tpu.pipeline_mode<synchronous>, transform_indices = @transform_6, window_bounds = array<i64: 1, 16>}, {transform_indices = @transform_7, window_bounds = array<i64: 16, 16>}]} {
    %c0 = arith.constant 0 : index
    %c0_0 = arith.constant 0 : index
    %0 = vector.load %arg1[%c0, %c0_0] : memref<16x32xbf16, #tpu.memory_space<vmem>>, vector<16x32xbf16>
    %c0_1 = arith.constant 0 : index
    %c0_2 = arith.constant 0 : index
    %1 = vector.load %arg2[%c0_1, %c0_2] : memref<32x64xbf16, #tpu.memory_space<vmem>>, vector<32x64xbf16>
    %cst = arith.constant dense<0.000000e+00> : vector<16x64xf32>
    %2 = tpu.matmul %0, %1, %cst {dimension_numbers = #tpu.dot_dimension_numbers<[1], [0], [0], [1], [0, 0, 1, 1], [], []>} : vector<16x32xbf16>, vector<32x64xbf16>, vector<16x64xf32> -> vector<16x64xf32>
    %c0_3 = arith.constant 0 : index
    %c0_4 = arith.constant 0 : index
    %3 = vector.load %arg3[%c0_3, %c0_4] : memref<1x64xf32, #tpu.memory_space<vmem>>, vector<1x64xf32>
    %4 = vector.broadcast %3 : vector<1x64xf32> to vector<16x64xf32>
    %5 = arith.addf %2, %4 : vector<16x64xf32>
    %cst_5 = arith.constant 0.000000e+00 : f32
    %6 = vector.broadcast %cst_5 : f32 to vector<16x64xf32>
    %7 = arith.maximumf %5, %6 : vector<16x64xf32>
    %8 = arith.truncf %7 : vector<16x64xf32> to vector<16x64xbf16>
    %c0_6 = arith.constant 0 : index
    %c0_7 = arith.constant 0 : index
    %9 = vector.load %arg4[%c0_6, %c0_7] : memref<64x64xbf16, #tpu.memory_space<vmem>>, vector<64x64xbf16>
    %cst_8 = arith.constant dense<0.000000e+00> : vector<16x64xf32>
    %10 = tpu.matmul %8, %9, %cst_8 {dimension_numbers = #tpu.dot_dimension_numbers<[1], [0], [0], [1], [0, 0, 1, 1], [], []>} : vector<16x64xbf16>, vector<64x64xbf16>, vector<16x64xf32> -> vector<16x64xf32>
    %c0_9 = arith.constant 0 : index
    %c0_10 = arith.constant 0 : index
    %11 = vector.load %arg5[%c0_9, %c0_10] : memref<1x64xf32, #tpu.memory_space<vmem>>, vector<1x64xf32>
    %12 = vector.broadcast %11 : vector<1x64xf32> to vector<16x64xf32>
    %13 = arith.addf %10, %12 : vector<16x64xf32>
    %cst_11 = arith.constant 0.000000e+00 : f32
    %14 = vector.broadcast %cst_11 : f32 to vector<16x64xf32>
    %15 = arith.maximumf %13, %14 : vector<16x64xf32>
    %16 = arith.truncf %15 : vector<16x64xf32> to vector<16x64xbf16>
    %c0_12 = arith.constant 0 : index
    %c0_13 = arith.constant 0 : index
    %17 = vector.load %arg6[%c0_12, %c0_13] : memref<64x16xbf16, #tpu.memory_space<vmem>>, vector<64x16xbf16>
    %cst_14 = arith.constant dense<0.000000e+00> : vector<16x16xf32>
    %18 = tpu.matmul %16, %17, %cst_14 {dimension_numbers = #tpu.dot_dimension_numbers<[1], [0], [0], [1], [0, 0, 1, 1], [], []>} : vector<16x64xbf16>, vector<64x16xbf16>, vector<16x16xf32> -> vector<16x16xf32>
    %c0_15 = arith.constant 0 : index
    %c0_16 = arith.constant 0 : index
    %19 = vector.load %arg7[%c0_15, %c0_16] : memref<1x16xf32, #tpu.memory_space<vmem>>, vector<1x16xf32>
    %20 = vector.broadcast %19 : vector<1x16xf32> to vector<16x16xf32>
    %21 = arith.addf %18, %20 : vector<16x16xf32>
    %cst_17 = arith.constant 0.000000e+00 : f32
    %22 = vector.broadcast %cst_17 : f32 to vector<16x16xf32>
    %23 = arith.subf %22, %21 : vector<16x16xf32>
    %24 = math.exp %23 : vector<16x16xf32>
    %cst_18 = arith.constant 1.000000e+00 : f32
    %25 = vector.broadcast %cst_18 : f32 to vector<16x16xf32>
    %26 = arith.addf %25, %24 : vector<16x16xf32>
    %27 = tpu.reciprocal %26 {approx = true} : vector<16x16xf32> -> vector<16x16xf32>
    %c0_19 = arith.constant 0 : index
    %c0_20 = arith.constant 0 : index
    %28 = vector.load %arg8[%c0_19, %c0_20] : memref<16x16xf32, #tpu.memory_space<vmem>>, vector<16x16xf32>
    tpu.vector_store %arg8[%c0_19, %c0_20], %27 {strides = array<i32>} : memref<16x16xf32, #tpu.memory_space<vmem>>, vector<16x16xf32>,
    return
  }
  func.func @transform_0(%arg0: i32) -> (i32, i32) {
    %c0_i32 = arith.constant 0 : i32
    %c0_i32_0 = arith.constant 0 : i32
    return %arg0, %c0_i32 : i32, i32
  }
  func.func @transform_1(%arg0: i32) -> (i32, i32) {
    %c0_i32 = arith.constant 0 : i32
    %c0_i32_0 = arith.constant 0 : i32
    %c0_i32_1 = arith.constant 0 : i32
    return %c0_i32, %c0_i32_0 : i32, i32
  }
  func.func @transform_2(%arg0: i32) -> (i32, i32) {
    %c0_i32 = arith.constant 0 : i32
    %c0_i32_0 = arith.constant 0 : i32
    %c0_i32_1 = arith.constant 0 : i32
    return %c0_i32, %c0_i32_0 : i32, i32
  }
  func.func @transform_3(%arg0: i32) -> (i32, i32) {
    %c0_i32 = arith.constant 0 : i32
    %c0_i32_0 = arith.constant 0 : i32
    %c0_i32_1 = arith.constant 0 : i32
    return %c0_i32, %c0_i32_0 : i32, i32
  }
  func.func @transform_4(%arg0: i32) -> (i32, i32) {
    %c0_i32 = arith.constant 0 : i32
    %c0_i32_0 = arith.constant 0 : i32
    %c0_i32_1 = arith.constant 0 : i32
    return %c0_i32, %c0_i32_0 : i32, i32
  }
  func.func @transform_5(%arg0: i32) -> (i32, i32) {
    %c0_i32 = arith.constant 0 : i32
    %c0_i32_0 = arith.constant 0 : i32
    %c0_i32_1 = arith.constant 0 : i32
    return %c0_i32, %c0_i32_0 : i32, i32
  }
  func.func @transform_6(%arg0: i32) -> (i32, i32) {
    %c0_i32 = arith.constant 0 : i32
    %c0_i32_0 = arith.constant 0 : i32
    %c0_i32_1 = arith.constant 0 : i32
    return %c0_i32, %c0_i32_0 : i32, i32
  }
  func.func @transform_7(%arg0: i32) -> (i32, i32) {
    %c0_i32 = arith.constant 0 : i32
    %c0_i32_0 = arith.constant 0 : i32
    return %arg0, %c0_i32 : i32, i32
  }
}

</mosaic_0001>

<llo_original>
// kernel: tpu_custom_call.1
$region0: #{tpu_custom_call.1}
  #allocation0 [shape = 'u32[]', space=smem, size = 0x4, offset = 0x4, fixed_abs, tag = 'smem constant byte address 0x4 - core index']
  #allocation1 [shape = 'u32[144,128]{1,0:T(1,128)}', space=vmem, size = 0x12000, scoped, tag = 'internal scratch']
  %s0 = inlined_call_operand.hbm [shape: bf16[16,32], index: 0, kind: input, shape index: {}]
  %s1 = inlined_call_operand.vmem [shape: bf16[32,64], index: 1, kind: input, shape index: {}]
  %s2 = inlined_call_operand.vmem [shape: f32[1,64], index: 2, kind: input, shape index: {}]
  %s3 = inlined_call_operand.vmem [shape: bf16[64,64], index: 3, kind: input, shape index: {}]
  %s4 = inlined_call_operand.vmem [shape: f32[1,64], index: 4, kind: input, shape index: {}]
  %s5 = inlined_call_operand.vmem [shape: bf16[64,16], index: 5, kind: input, shape index: {}]
  %s6 = inlined_call_operand.vmem [shape: f32[1,16], index: 6, kind: input, shape index: {}]
  %s7 = inlined_call_operand.hbm [shape: f32[16,16], index: 7, kind: output, shape index: {}]
  %s8 = sld [smem:[#allocation0]]
  $region42: #{tpu_custom_call.1} parent=0
    _
  %s10 = ssub.s32 1, %s8
  %s11 = scalar_select 0, %s10, %s8
  $region1: #{tpu_custom_call.1} parent=0
    #allocation2 [shape = 'u8[4096]{0}', space=vmem, size = 0x1000, scoped, tag = 'input window, operand 0, single buffered']
    #allocation3 [shape = 's32[1]{0}', space=sflag, size = 0x4, scoped, tag = 'scoped memory for tpu_custom_call.1']
    #allocation4 [shape = 's32[1]{0}', space=sflag, size = 0x4, scoped, tag = 'scoped memory for tpu_custom_call.1']
    #allocation5 [shape = 'u8[8192]{0}', space=vmem, size = 0x2000, scoped, tag = 'output window, operand 0, single buffered']
    %12 = vsyncpa [#allocation3], 0
    %13 = vsyncpa [#allocation4], 0
    // Predicated region
    $region2: #{tpu_custom_call.1} parent=1 // pred_check
      _
    $region3: #{tpu_custom_call.1} parent=1 // pred_check_branch
      %15 = sbr.rel (0) target = $region5
    $region4: #{tpu_custom_call.1} parent=1 // pred_region
      %s17 = ssub.s32 128, 128
      %18 = vsyncadd [#allocation3], %s17
      %s19 = sshll.u32 [#allocation2], 4
      %s20 = int_to_ptr.vmem [resolvable:$true] %s19
      %25 = dma.hbm_to_vmem [thread:$0]  %s0, 128, %s20, [#allocation3], 64, 64, 4
    $region5: #{tpu_custom_call.1} parent=1 // pred_fallthru
      _
    // Predicated region
    $region6: #{tpu_custom_call.1} parent=1 // pred_check
      _
    $region7: #{tpu_custom_call.1} parent=1 // pred_check_branch
      %27 = sbr.rel (0) target = $region9
    $region8: #{tpu_custom_call.1} parent=1 // pred_region
      _
    $region9: #{tpu_custom_call.1} parent=1 // pred_fallthru
      _
    // Predicated region
    $region10: #{tpu_custom_call.1} parent=1 // pred_check
      _
    $region11: #{tpu_custom_call.1} parent=1 // pred_check_branch
      %29 = sbr.rel (0) target = $region13
    $region12: #{tpu_custom_call.1} parent=1 // pred_region
      _
    $region13: #{tpu_custom_call.1} parent=1 // pred_fallthru
      _
    // Predicated region
    $region14: #{tpu_custom_call.1} parent=1 // pred_check
      _
    $region15: #{tpu_custom_call.1} parent=1 // pred_check_branch
      %31 = sbr.rel (0) target = $region17
    $region16: #{tpu_custom_call.1} parent=1 // pred_region
      _
    $region17: #{tpu_custom_call.1} parent=1 // pred_fallthru
      _
    // Predicated region
    $region18: #{tpu_custom_call.1} parent=1 // pred_check
      _
    $region19: #{tpu_custom_call.1} parent=1 // pred_check_branch
      %33 = sbr.rel (0) target = $region21
    $region20: #{tpu_custom_call.1} parent=1 // pred_region
      _
    $region21: #{tpu_custom_call.1} parent=1 // pred_fallthru
      _
    // Predicated region
    $region22: #{tpu_custom_call.1} parent=1 // pred_check
      _
    $region23: #{tpu_custom_call.1} parent=1 // pred_check_branch
      %35 = sbr.rel (0) target = $region25
    $region24: #{tpu_custom_call.1} parent=1 // pred_region
      _
    $region25: #{tpu_custom_call.1} parent=1 // pred_fallthru
      _
    // Predicated region
    $region26: #{tpu_custom_call.1} parent=1 // pred_check
      _
    $region27: #{tpu_custom_call.1} parent=1 // pred_check_branch
      %37 = sbr.rel (0) target = $region29
    $region28: #{tpu_custom_call.1} parent=1 // pred_region
      _
    $region29: #{tpu_custom_call.1} parent=1 // pred_fallthru
      _
    // Predicated region
    $region30: #{tpu_custom_call.1} parent=1 // pred_check
      _
    $region31: #{tpu_custom_call.1} parent=1 // pred_check_branch
      %39 = sbr.rel (0) target = $region33
    $region32: #{tpu_custom_call.1} parent=1 // pred_region
      %40 = dma.done [#allocation3], 128
    $region33: #{tpu_custom_call.1} parent=1 // pred_fallthru
      _
    %v42 = vld [vmem:[#allocation2] sm:$0xf]
    %v43 = vld [vmem:[#allocation2 + $0x4] sm:$0xf]
    %v44 = vld [vmem:[%s1] sm:$0xf]
    %v45 = vld [vmem:[%s1 + $0x4] sm:$0xf]
    %v46 = vld [vmem:[%s1 + $0x8] sm:$0xf]
    %v47 = vld [vmem:[%s1 + $0xc] sm:$0xf]
    %v48 = vld [vmem:[%s2] sm:$0x1]
    %v50 = vlaneseq
    %v51 = vshrl.u32 %v50, 7
    %v52 = vsub.s32 0, %v51
    %v53 = vrot.slane %v48, %v52
    %v57 = vunpack.c.l.b16 %v42
    %v58 = vunpack.c.l.b16 %v43
    %v59 = vpack.c.b16 %v58, %v57
    %v64 = vunpack.c.l.b16 %v44
    %v65 = vunpack.c.l.b16 %v45
    %v66 = vunpack.c.l.b16 %v46
    %v67 = vunpack.c.l.b16 %v47
    %v68 = vpack.c.b16 %v65, %v64
    %v69 = vpack.c.b16 %v67, %v66
    %vm72 = vcmask 261120
    %v74 = vsel %vm72, %v59, 0
    %76 = vmatprep.subr.bf16.mxu0 0
    %77 = vmatpush1.bf16.msra.mxu0 %v68
    %78 = vmatprep.subr.bf16.mxu0 0
    %79 = vmatpush1.bf16.msra.mxu0 %v69
    %80 = vmatprep.subr.bf16.mxu0 0
    %81 = vmatpush1.bf16.msra.mxu0 0
    %82 = vmatprep.subr.bf16.mxu0 0
    %83 = vmatpush1.bf16.msra.mxu0 0
    %84 = vmatprep.subr.bf16.mxu0 0
    %85 = vmatpush1.bf16.msra.mxu0 0
    %86 = vmatprep.subr.bf16.mxu0 0
    %87 = vmatpush1.bf16.msra.mxu0 0
    %88 = vmatprep.subr.bf16.mxu0 0
    %89 = vmatpush1.bf16.msra.mxu0 0
    %90 = vmatprep.subr.bf16.mxu0 0
    %91 = vmatpush1.bf16.msra.mxu0 0
    %92 = vmatprep.subr.bf16.mxu0 0
    %93 = vmatpush1.bf16.msra.mxu0 0
    %94 = vmatprep.subr.bf16.mxu0 0
    %95 = vmatpush1.bf16.msra.mxu0 0
    %96 = vmatprep.subr.bf16.mxu0 0
    %97 = vmatpush1.bf16.msra.mxu0 0
    %98 = vmatprep.subr.bf16.mxu0 0
    %99 = vmatpush1.bf16.msra.mxu0 0
    %100 = vmatprep.subr.bf16.mxu0 0
    %101 = vmatpush1.bf16.msra.mxu0 0
    %102 = vmatprep.subr.bf16.mxu0 0
    %103 = vmatpush1.bf16.msra.mxu0 0
    %104 = vmatprep.subr.bf16.mxu0 0
    %105 = vmatpush1.bf16.msra.mxu0 0
    %106 = vmatprep.subr.bf16.mxu0 0
    %107 = vmatpush1.bf16.msra.mxu0 0
    %108 = vmatprep.mubr.bf16.mxu0 0
    %109 = vmatmul.mubr.bf16.gmra.mrb[0].mxu0 %v74
    %v110 = vpop.f32.mrb[0].mxu0
    %v111 = vadd.f32 %v53, %v110
    %v112 = vpop.f32.mrb[0].mxu0
    %v113 = vpop.f32.mrb[0].mxu0
    %v114 = vadd.f32 %v53, %v113
    %v115 = vpop.f32.mrb[0].mxu0
    %116 = vdwg.mxu0
    %v117 = vmax.f32 %v111, 0.0
    %v118 = vmax.f32 %v114, 0.0
    %v119 = vpack.c.bf16 %v118, %v117
    %v120 = vld [vmem:[%s3] sm:$0xf]
    %v121 = vld [vmem:[%s3 + $0x4] sm:$0xf]
    %v122 = vld [vmem:[%s3 + $0x8] sm:$0xf]
    %v123 = vld [vmem:[%s3 + $0xc] sm:$0xf]
    %v124 = vld [vmem:[%s3 + $0x10] sm:$0xf]
    %v125 = vld [vmem:[%s3 + $0x14] sm:$0xf]
    %v126 = vld [vmem:[%s3 + $0x18] sm:$0xf]
    %v127 = vld [vmem:[%s3 + $0x1c] sm:$0xf]
    %v128 = vld [vmem:[%s4] sm:$0x1]
    %v130 = vlaneseq
    %v131 = vshrl.u32 %v130, 7
    %v132 = vsub.s32 0, %v131
    %v133 = vrot.slane %v128, %v132
    %v143 = vunpack.c.l.b16 %v120
    %v144 = vunpack.c.l.b16 %v121
    %v145 = vunpack.c.l.b16 %v122
    %v146 = vunpack.c.l.b16 %v123
    %v147 = vunpack.c.l.b16 %v124
    %v148 = vunpack.c.l.b16 %v125
    %v149 = vunpack.c.l.b16 %v126
    %v150 = vunpack.c.l.b16 %v127
    %v151 = vpack.c.b16 %v144, %v143
    %v152 = vpack.c.b16 %v146, %v145
    %v153 = vpack.c.b16 %v148, %v147
    %v154 = vpack.c.b16 %v150, %v149
    %vm159 = vcmask 523264
    %v161 = vsel %vm159, %v119, 0
    %163 = vmatprep.subr.bf16.mxu0 0
    %164 = vmatpush1.bf16.msra.mxu0 %v151
    %165 = vmatprep.subr.bf16.mxu0 0
    %166 = vmatpush1.bf16.msra.mxu0 %v152
    %167 = vmatprep.subr.bf16.mxu0 0
    %168 = vmatpush1.bf16.msra.mxu0 %v153
    %169 = vmatprep.subr.bf16.mxu0 0
    %170 = vmatpush1.bf16.msra.mxu0 %v154
    %171 = vmatprep.subr.bf16.mxu0 0
    %172 = vmatpush1.bf16.msra.mxu0 0
    %173 = vmatprep.subr.bf16.mxu0 0
    %174 = vmatpush1.bf16.msra.mxu0 0
    %175 = vmatprep.subr.bf16.mxu0 0
    %176 = vmatpush1.bf16.msra.mxu0 0
    %177 = vmatprep.subr.bf16.mxu0 0
    %178 = vmatpush1.bf16.msra.mxu0 0
    %179 = vmatprep.subr.bf16.mxu0 0
    %180 = vmatpush1.bf16.msra.mxu0 0
    %181 = vmatprep.subr.bf16.mxu0 0
    %182 = vmatpush1.bf16.msra.mxu0 0
    %183 = vmatprep.subr.bf16.mxu0 0
    %184 = vmatpush1.bf16.msra.mxu0 0
    %185 = vmatprep.subr.bf16.mxu0 0
    %186 = vmatpush1.bf16.msra.mxu0 0
    %187 = vmatprep.subr.bf16.mxu0 0
    %188 = vmatpush1.bf16.msra.mxu0 0
    %189 = vmatprep.subr.bf16.mxu0 0
    %190 = vmatpush1.bf16.msra.mxu0 0
    %191 = vmatprep.subr.bf16.mxu0 0
    %192 = vmatpush1.bf16.msra.mxu0 0
    %193 = vmatprep.subr.bf16.mxu0 0
    %194 = vmatpush1.bf16.msra.mxu0 0
    %195 = vmatprep.mubr.bf16.mxu0 0
    %196 = vmatmul.mubr.bf16.gmra.mrb[0].mxu0 %v161
    %v197 = vpop.f32.mrb[0].mxu0
    %v198 = vadd.f32 %v133, %v197
    %v199 = vpop.f32.mrb[0].mxu0
    %v200 = vpop.f32.mrb[0].mxu0
    %v201 = vadd.f32 %v133, %v200
    %v202 = vpop.f32.mrb[0].mxu0
    %203 = vdwg.mxu0
    %v204 = vmax.f32 %v198, 0.0
    %v205 = vmax.f32 %v201, 0.0
    %v206 = vpack.c.bf16 %v205, %v204
    %v207 = vld [vmem:[%s5] sm:$0xf]
    %v208 = vld [vmem:[%s5 + $0x4] sm:$0xf]
    %v209 = vld [vmem:[%s5 + $0x8] sm:$0xf]
    %v210 = vld [vmem:[%s5 + $0xc] sm:$0xf]
    %v211 = vld [vmem:[%s5 + $0x10] sm:$0xf]
    %v212 = vld [vmem:[%s5 + $0x14] sm:$0xf]
    %v213 = vld [vmem:[%s5 + $0x18] sm:$0xf]
    %v214 = vld [vmem:[%s5 + $0x1c] sm:$0xf]
    %v215 = vld [vmem:[%s6] sm:$0x1]
    %v217 = vlaneseq
    %v218 = vshrl.u32 %v217, 7
    %v219 = vsub.s32 0, %v218
    %v220 = vrot.slane %v215, %v219
    %v230 = vunpack.c.l.b16 %v207
    %v231 = vunpack.c.l.b16 %v208
    %v232 = vunpack.c.l.b16 %v209
    %v233 = vunpack.c.l.b16 %v210
    %v234 = vunpack.c.l.b16 %v211
    %v235 = vunpack.c.l.b16 %v212
    %v236 = vunpack.c.l.b16 %v213
    %v237 = vunpack.c.l.b16 %v214
    %v238 = vpack.c.b16 %v231, %v230
    %v239 = vpack.c.b16 %v233, %v232
    %v240 = vpack.c.b16 %v235, %v234
    %v241 = vpack.c.b16 %v237, %v236
    %v247 = vsel %vm159, %v206, 0
    %249 = vmatprep.subr.bf16.mxu0 0
    %250 = vmatpush1.bf16.msra.mxu0 %v238
    %251 = vmatprep.subr.bf16.mxu0 0
    %252 = vmatpush1.bf16.msra.mxu0 %v239
    %253 = vmatprep.subr.bf16.mxu0 0
    %254 = vmatpush1.bf16.msra.mxu0 %v240
    %255 = vmatprep.subr.bf16.mxu0 0
    %256 = vmatpush1.bf16.msra.mxu0 %v241
    %257 = vmatprep.subr.bf16.mxu0 0
    %258 = vmatpush1.bf16.msra.mxu0 0
    %259 = vmatprep.subr.bf16.mxu0 0
    %260 = vmatpush1.bf16.msra.mxu0 0
    %261 = vmatprep.subr.bf16.mxu0 0
    %262 = vmatpush1.bf16.msra.mxu0 0
    %263 = vmatprep.subr.bf16.mxu0 0
    %264 = vmatpush1.bf16.msra.mxu0 0
    %265 = vmatprep.subr.bf16.mxu0 0
    %266 = vmatpush1.bf16.msra.mxu0 0
    %267 = vmatprep.subr.bf16.mxu0 0
    %268 = vmatpush1.bf16.msra.mxu0 0
    %269 = vmatprep.subr.bf16.mxu0 0
    %270 = vmatpush1.bf16.msra.mxu0 0
    %271 = vmatprep.subr.bf16.mxu0 0
    %272 = vmatpush1.bf16.msra.mxu0 0
    %273 = vmatprep.subr.bf16.mxu0 0
    %274 = vmatpush1.bf16.msra.mxu0 0
    %275 = vmatprep.subr.bf16.mxu0 0
    %276 = vmatpush1.bf16.msra.mxu0 0
    %277 = vmatprep.subr.bf16.mxu0 0
    %278 = vmatpush1.bf16.msra.mxu0 0
    %279 = vmatprep.subr.bf16.mxu0 0
    %280 = vmatpush1.bf16.msra.mxu0 0
    %281 = vmatprep.mubr.bf16.mxu0 0
    %282 = vmatmul.mubr.bf16.gmra.mrb[0].mxu0 %v247
    %v283 = vpop.f32.mrb[0].mxu0
    %v284 = vadd.f32 %v220, %v283
    %v285 = vpop.f32.mrb[0].mxu0
    %v286 = vpop.f32.mrb[0].mxu0
    %v287 = vadd.f32 %v220, %v286
    %v288 = vpop.f32.mrb[0].mxu0
    %289 = vdwg.mxu0
    %v290 = vsub.f32 0.0, %v284
    %v291 = vsub.f32 0.0, %v287
    %v292 = vmul.f32 %v290, 1.442695
    %v293 = vpow.pop %v292
    %v294 = vmul.f32 %v291, 1.442695
    %v295 = vpow.pop %v294
    %v296 = vadd.f32 %v293, 1.0
    %v297 = vadd.f32 %v295, 1.0
    %v298 = vrcp.pop %v296
    %v299 = vrcp.pop %v297
    %vm300 = vcmask 130048
    %301 = vst.msk [vmem:[#allocation5] sm:$0xff] %vm300, %v298
    %302 = vst.msk [vmem:[#allocation5 + $0x8] sm:$0xff] %vm300, %v299
    // Predicated region
    $region34: #{tpu_custom_call.1} parent=1 // pred_check
      _
    $region35: #{tpu_custom_call.1} parent=1 // pred_check_branch
      %304 = sbr.rel (0) target = $region37
    $region36: #{tpu_custom_call.1} parent=1 // pred_region
      %s306 = ssub.s32 256, 256
      %307 = vsyncadd [#allocation4], %s306
      %s308 = sshll.u32 [#allocation5], 4
      %s309 = int_to_ptr.vmem [resolvable:$true] %s308
      %314 = dma.vmem_to_hbm [thread:$0]  %s309, 256, %s7, [#allocation4], 128, 128, 8
    $region37: #{tpu_custom_call.1} parent=1 // pred_fallthru
      _
    // Predicated region
    $region38: #{tpu_custom_call.1} parent=1 // pred_check
      _
    $region39: #{tpu_custom_call.1} parent=1 // pred_check_branch
      %316 = sbr.rel (0) target = $region41
    $region40: #{tpu_custom_call.1} parent=1 // pred_region
      %317 = dma.done [#allocation4], 256
    $region41: #{tpu_custom_call.1} parent=1 // pred_fallthru
      _
    %318 = vsyncpa [#allocation3], 1
    %319 = vsyncpa [#allocation4], 1

</llo_original>
